<compile_context>
chip_gen: v6e
topology: v6e:2x2x1
jax: 0.10.0
libtpu: 0.0.40
codegen_flags: <defaults>
</compile_context>

<pallas_src>
import jax
import jax.numpy as jnp
from jax import lax
from jax.experimental import pallas as pl
from jax.experimental.pallas import tpu as pltpu


def _round_up(x, m):
    return (x + m - 1) // m * m


def _make_layernorm_kernel(eps: float, d_model: int):
    inv_d = 1.0 / float(d_model)
    # torch.std uses Bessel's correction (divide by N-1)
    inv_denom = 1.0 / float(max(d_model - 1, 1))
    d_f = float(d_model)

    def kernel(alpha_ref, beta_ref, x_ref, o_ref):
        # alpha_ref/beta_ref: (1,) f32 scalars in SMEM; x_ref/o_ref: (TM, D) VMEM
        alpha = alpha_ref[0]
        beta = beta_ref[0]
        x = x_ref[...].astype(jnp.float32)
        # single-pass statistics: two back-to-back lane reductions
        s = jnp.sum(x, axis=-1, keepdims=True)
        sq = jnp.sum(x * x, axis=-1, keepdims=True)
        mean = s * inv_d
        var = jnp.maximum((sq - d_f * mean * mean) * inv_denom, 0.0)
        scale = alpha * lax.rsqrt(var + eps)          # (TM,1): fold alpha in
        o_ref[...] = ((x - mean) * scale + beta).astype(o_ref.dtype)

    return kernel


def layer_normalization(x, alpha, beta, *, eps=1e-5):
    """Pallas implementation of the custom LayerNormalization.

    x:     (batch, seq, d_model)
    alpha: (1,)  scalar gain   (nn.Parameter(torch.ones(1)))
    beta:  (1,)  scalar shift  (nn.Parameter(torch.zeros(1)))
    """
    B, S, D = x.shape
    M = B * S
    x2d = x.reshape(M, D)

    itemsize = jnp.dtype(x.dtype).itemsize
    row_align = 8 if itemsize >= 4 else 16

    # Row tile: biggest tile whose double-buffered in+out footprint fits a
    # generation-safe VMEM budget (safe even on v7x's 64 MiB physical VMEM),
    # capped at 1024 rows; shrink so the grid has >= 2 balanced steps so
    # "parallel" semantics actually use both TensorCores on v7x.
    vmem_tile_budget = 24 * 1024 * 1024
    bytes_per_row = 2 * 2 * D * itemsize          # 2 arrays (in/out) x 2 buffers
    tm_cap = max(row_align, (vmem_tile_budget // bytes_per_row) // row_align * row_align)
    tm_cap = min(tm_cap, 1024)
    tm_split = _round_up(pl.cdiv(M, 2), row_align)
    tm = max(row_align, min(tm_cap, tm_split))

    grid = (pl.cdiv(M, tm),)                      # partial last block is masked

    alpha1 = jnp.asarray(alpha, jnp.float32).reshape(1)
    beta1 = jnp.asarray(beta, jnp.float32).reshape(1)

    kernel = _make_layernorm_kernel(float(eps), D)

    cost = pl.CostEstimate(
        flops=6 * M * D,
        transcendentals=M,
        bytes_accessed=2 * M * D * itemsize,
    )

    out2d = pl.pallas_call(
        kernel,
        out_shape=jax.ShapeDtypeStruct((M, D), x.dtype),
        grid_spec=pltpu.PrefetchScalarGridSpec(
            num_scalar_prefetch=2,                # alpha, beta -> SMEM scalars
            grid=grid,
            in_specs=[
                pl.BlockSpec((tm, D), lambda i, a, b: (i, 0)),   # x row tile
            ],
            out_specs=pl.BlockSpec((tm, D), lambda i, a, b: (i, 0)),
        ),
        compiler_params=pltpu.CompilerParams(
            dimension_semantics=("parallel",),
            vmem_limit_bytes=48 * 1024 * 1024,
        ),
        cost_estimate=cost,
    )(alpha1, beta1, x2d)

    return out2d.reshape(B, S, D)


def encoder_forward(x, mask, layers, alpha, beta, *, eps=1e-5):
    """Encoder.forward: apply each layer(x, mask), then LayerNormalization."""
    # TODO(synk): the encoder sub-layers (EncoderBlock) are not defined in the
    # spec; they are applied here as opaque JAX callables (empty => identity),
    # only the final LayerNormalization runs as a Pallas kernel.
    for layer in layers:
        x = layer(x, mask)
    return layer_normalization(x, alpha, beta, eps=eps)


if __name__ == "__main__":
    # Small deterministic example consistent with the Encoder forward.
    batch, seq, d_model = 2, 8, 128   # lane-dense last dim (multiple of 128)
    eps = 1e-5

    key = jax.random.PRNGKey(0)
    x = jax.random.normal(key, (batch, seq, d_model), dtype=jnp.float32)
    mask = jnp.ones((batch, 1, seq, seq), dtype=jnp.float32)  # passed to layers

    alpha = jnp.ones((1,), dtype=jnp.float32)   # nn.Parameter(torch.ones(1))
    beta = jnp.zeros((1,), dtype=jnp.float32)   # nn.Parameter(torch.zeros(1))

    layers = []  # Encoder(nn.ModuleList([])): sub-layer contents not in spec

    y = encoder_forward(x, mask, layers, alpha, beta, eps=eps)
    y = jax.block_until_ready(y)

    # Pure-JAX reference matching the PyTorch module:
    #   alpha * (x - mean) / sqrt(std**2 + eps) + beta, torch.std unbiased.
    mean = x.mean(axis=-1, keepdims=True)
    var = jnp.var(x, axis=-1, keepdims=True, ddof=1)
    y_ref = alpha * (x - mean) / jnp.sqrt(var + eps) + beta

    assert y.shape == (batch, seq, d_model)
    assert jnp.allclose(y, y_ref, atol=1e-5, rtol=1e-5)

    print("KERNEL_OK")
</pallas_src>

<mosaic_0001>
module attributes {stable_mosaic.version = 11 : i64} {
  func.func @kernel(%arg0: i32, %arg1: memref<1xf32, #tpu.memory_space<smem>>, %arg2: memref<1xf32, #tpu.memory_space<smem>>, %arg3: memref<8x128xf32, #tpu.memory_space<vmem>>, %arg4: memref<8x128xf32, #tpu.memory_space<vmem>>) attributes {dimension_semantics = [#tpu.dimension_semantics<parallel>], iteration_bounds = array<i64: 2>, scalar_prefetch = 2 : i64, scratch_operands = 0 : i64, tpu.core_type = #tpu.core_type<tc>, window_params = [{transform_indices = @transform_0, window_bounds = array<i64: 8, 128>}, {transform_indices = @transform_1, window_bounds = array<i64: 8, 128>}]} {
    %c0 = arith.constant 0 : index
    %0 = memref.load %arg1[%c0] : memref<1xf32, #tpu.memory_space<smem>>
    %c0_0 = arith.constant 0 : index
    %1 = memref.load %arg2[%c0_0] : memref<1xf32, #tpu.memory_space<smem>>
    %c0_1 = arith.constant 0 : index
    %c0_2 = arith.constant 0 : index
    %2 = vector.load %arg3[%c0_1, %c0_2] : memref<8x128xf32, #tpu.memory_space<vmem>>, vector<8x128xf32>
    %cst = arith.constant dense<0.000000e+00> : vector<8xf32>
    %3 = vector.multi_reduction <add>, %2, %cst [1] : vector<8x128xf32> to vector<8xf32>
    %4 = vector.shape_cast %3 : vector<8xf32> to vector<8x1xf32>
    %5 = arith.mulf %2, %2 : vector<8x128xf32>
    %cst_3 = arith.constant dense<0.000000e+00> : vector<8xf32>
    %6 = vector.multi_reduction <add>, %5, %cst_3 [1] : vector<8x128xf32> to vector<8xf32>
    %7 = vector.shape_cast %6 : vector<8xf32> to vector<8x1xf32>
    %cst_4 = arith.constant 7.812500e-03 : f32
    %8 = vector.broadcast %cst_4 : f32 to vector<8x1xf32>
    %9 = arith.mulf %4, %8 : vector<8x1xf32>
    %cst_5 = arith.constant 1.280000e+02 : f32
    %10 = vector.broadcast %cst_5 : f32 to vector<8x1xf32>
    %11 = arith.mulf %10, %9 : vector<8x1xf32>
    %12 = arith.mulf %11, %9 : vector<8x1xf32>
    %13 = arith.subf %7, %12 : vector<8x1xf32>
    %cst_6 = arith.constant 0.00787401571 : f32
    %14 = vector.broadcast %cst_6 : f32 to vector<8x1xf32>
    %15 = arith.mulf %13, %14 : vector<8x1xf32>
    %cst_7 = arith.constant 0.000000e+00 : f32
    %16 = vector.broadcast %cst_7 : f32 to vector<8x1xf32>
    %17 = arith.maximumf %15, %16 : vector<8x1xf32>
    %cst_8 = arith.constant 9.99999974E-6 : f32
    %18 = vector.broadcast %cst_8 : f32 to vector<8x1xf32>
    %19 = arith.addf %17, %18 : vector<8x1xf32>
    %20 = math.rsqrt %19 : vector<8x1xf32>
    %21 = vector.broadcast %0 : f32 to vector<8x1xf32>
    %22 = arith.mulf %21, %20 : vector<8x1xf32>
    %23 = vector.broadcast %9 : vector<8x1xf32> to vector<8x128xf32>
    %24 = arith.subf %2, %23 : vector<8x128xf32>
    %25 = vector.broadcast %22 : vector<8x1xf32> to vector<8x128xf32>
    %26 = arith.mulf %24, %25 : vector<8x128xf32>
    %27 = vector.broadcast %1 : f32 to vector<8x128xf32>
    %28 = arith.addf %26, %27 : vector<8x128xf32>
    %c0_9 = arith.constant 0 : index
    %c0_10 = arith.constant 0 : index
    %29 = vector.load %arg4[%c0_9, %c0_10] : memref<8x128xf32, #tpu.memory_space<vmem>>, vector<8x128xf32>
    tpu.vector_store %arg4[%c0_9, %c0_10], %28 {strides = array<i32>} : memref<8x128xf32, #tpu.memory_space<vmem>>, vector<8x128xf32>,
    return
  }
  func.func @transform_0(%arg0: i32, %arg1: memref<1xf32, #tpu.memory_space<smem>>, %arg2: memref<1xf32, #tpu.memory_space<smem>>) -> (i32, i32) {
    %c0_i32 = arith.constant 0 : i32
    %c0_i32_0 = arith.constant 0 : i32
    return %arg0, %c0_i32 : i32, i32
  }
  func.func @transform_1(%arg0: i32, %arg1: memref<1xf32, #tpu.memory_space<smem>>, %arg2: memref<1xf32, #tpu.memory_space<smem>>) -> (i32, i32) {
    %c0_i32 = arith.constant 0 : i32
    %c0_i32_0 = arith.constant 0 : i32
    return %arg0, %c0_i32 : i32, i32
  }
}

</mosaic_0001>

<llo_original>
// kernel: tpu_custom_call.1
$region0: #{tpu_custom_call.1}
  #allocation0 [shape = 'u32[]', space=smem, size = 0x4, offset = 0x4, fixed_abs, tag = 'smem constant byte address 0x4 - core index']
  #allocation1 [shape = 'u32[144,128]{1,0:T(1,128)}', space=vmem, size = 0x12000, scoped, tag = 'internal scratch']
  #allocation2 [shape = 's32[1]{0}', space=sflag, size = 0x4, scoped, tag = 'scoped memory for tpu_custom_call.1']
  #allocation3 [shape = 'f32[1]{0:T(128)S(6)}', space=smem, size = 0x200, scoped, tag = 'prefetched SMEM operand 0']
  #allocation4 [shape = 'f32[1]{0:T(128)S(6)}', space=smem, size = 0x200, scoped, tag = 'prefetched SMEM operand 1']
  %s0 = inlined_call_operand.<no memory space> [shape: f32[1], index: 0, kind: input, shape index: {}]
  %s1 = inlined_call_operand.<no memory space> [shape: f32[1], index: 1, kind: input, shape index: {}]
  %s2 = inlined_call_operand.hbm [shape: f32[16,128], index: 2, kind: input, shape index: {}]
  %s3 = inlined_call_operand.hbm [shape: f32[16,128], index: 3, kind: output, shape index: {}]
  %s4 = sld [smem:[#allocation0]]
  $region41: #{tpu_custom_call.1} parent=0
    _
  %s6 = ssub.s32 1, %s4
  %s7 = scalar_select 0, %s6, %s4
  %8 = sst [smem:[#allocation3]] %s0
  %9 = sst [smem:[#allocation4]] %s1
  $region1: #{tpu_custom_call.1} parent=0
    #allocation5 [shape = 'u8[8192]{0}', space=vmem, size = 0x2000, scoped, tag = 'input window, operand 2']
    #allocation6 [shape = 's32[2]{0}', space=sflag, size = 0x8, scoped, tag = 'scoped memory for tpu_custom_call.1']
    #allocation7 [shape = 's32[2]{0}', space=sflag, size = 0x8, scoped, tag = 'scoped memory for tpu_custom_call.1']
    #allocation8 [shape = 'u8[8192]{0}', space=vmem, size = 0x2000, scoped, tag = 'output window, operand 0']
    %10 = vsyncpa [#allocation6], 0
    %s11 = scalar_lea.sflag [#allocation6], 1
    %12 = vsyncpa %s11, 0
    %13 = vsyncpa [#allocation7], 0
    %s14 = scalar_lea.sflag [#allocation7], 1
    %15 = vsyncpa %s14, 0
    loop: start=0, step=1, limit=4
    $region2: #{tpu_custom_call.1} parent=1 // loop_pre_header
      _
    $region3: #{tpu_custom_call.1} parent=1 // loop_header
      %s17 = sphi 0, %s21
      %p18 = scmp.ge.s32.totalorder %s17, 4
      %s27 = sphi 0, %s29
      %s30 = sphi 0, %s27
      %s31 = sphi 0, %s30
      %s47 = sphi 0, %s31
      %s53 = sphi 0, %s55
      %s56 = sphi 0, %s53
      %s57 = sphi 0, %s56
      %s73 = sphi 0, %s57
    $region4: #{tpu_custom_call.1} parent=1 // loop_header_branch
      %20 = sbr.rel (%p18) target = $region8
    $region5: #{tpu_custom_call.1} parent=1 // loop_body
      %s22 = ssub.s32 %s17, 1
      %s23 = ssub.s32 %s17, 2
      %s24 = sadd.s32 %s17, 1
      %s25 = ssub.s32 %s17, %s24
      %p26 = scmp.eq.s32.totalorder %s25, 0
      %s28 = sadd.s32 %s27, 1
      %s29 = scalar_select %p26, %s27, %s28
      %p32 = pneg %p26
      %p33 = scmp.eq.s32.totalorder %s17, 1
      %p34 = por %p32, %p33
      %p35 = scmp.ne.s32.totalorder %s27, %s30
      %p36 = scmp.eq.s32.totalorder %s17, 0
      %p37 = por %p35, %p36
      %p38 = scmp.ne.s32.totalorder %s27, %s30
      %p39 = scmp.eq.s32.totalorder %s22, 1
      %p40 = por %p38, %p39
      %p41 = scmp.ne.s32.totalorder %s30, %s31
      %p42 = scmp.eq.s32.totalorder %s22, 0
      %p43 = por %p41, %p42
      %p44 = scmp.ne.s32.totalorder %s30, %s31
      %p45 = scmp.eq.s32.totalorder %s23, 1
      %p46 = por %p44, %p45
      %p48 = scmp.ne.s32.totalorder %s31, %s47
      %p49 = scmp.eq.s32.totalorder %s23, 0
      %p50 = por %p48, %p49
      %s51 = ssub.s32 %s17, %s24
      %p52 = scmp.eq.s32.totalorder %s51, 0
      %s54 = sadd.s32 %s53, 1
      %s55 = scalar_select %p52, %s53, %s54
      %p58 = pneg %p52
      %p59 = scmp.eq.s32.totalorder %s17, 1
      %p60 = por %p58, %p59
      %p61 = scmp.ne.s32.totalorder %s53, %s56
      %p62 = scmp.eq.s32.totalorder %s17, 0
      %p63 = por %p61, %p62
      %p64 = scmp.ne.s32.totalorder %s53, %s56
      %p65 = scmp.eq.s32.totalorder %s22, 1
      %p66 = por %p64, %p65
      %p67 = scmp.ne.s32.totalorder %s56, %s57
      %p68 = scmp.eq.s32.totalorder %s22, 0
      %p69 = por %p67, %p68
      %p70 = scmp.ne.s32.totalorder %s56, %s57
      %p71 = scmp.eq.s32.totalorder %s23, 1
      %p72 = por %p70, %p71
      %p74 = scmp.ne.s32.totalorder %s57, %s73
      %p75 = scmp.eq.s32.totalorder %s23, 0
      %p76 = por %p74, %p75
      %p77 = scmp.le.s32.totalorder 1, %s17
      %p78 = scmp.lt.s32.totalorder %s17, 3
      %p79 = pnand %p77, %p78
      %p80 = pneg %p79
      // Predicated region
      $region9: #{tpu_custom_call.1} parent=5 // pred_check
        _
      $region10: #{tpu_custom_call.1} parent=5 // pred_check_branch
        %82 = sbr.rel (%p79) target = $region12
      $region11: #{tpu_custom_call.1} parent=5 // pred_region
        %s83 = ssub.s32 %s17, 1
      $region12: #{tpu_custom_call.1} parent=5 // pred_fallthru
        _
      %p84 = scmp.lt.s32.totalorder %s17, 2
      // Predicated region
      $region13: #{tpu_custom_call.1} parent=5 // pred_check
        %p85 = pneg %p84
      $region14: #{tpu_custom_call.1} parent=5 // pred_check_branch
        %87 = sbr.rel (%p85) target = $region16
      $region15: #{tpu_custom_call.1} parent=5 // pred_region
        // Predicated region
        $region17: #{tpu_custom_call.1} parent=15 // pred_check
          %p88 = pneg %p37
        $region18: #{tpu_custom_call.1} parent=15 // pred_check_branch
          %90 = sbr.rel (%p88) target = $region20
        $region19: #{tpu_custom_call.1} parent=15 // pred_region
          %s91 = sand.u32 %s27, 1
          %s92 = scalar_lea.sflag [#allocation6], %s91
          %s93 = sand.u32 %s27, 1
          %s94 = smul.addr %s93, 8
          %s95 = scalar_lea.vmem [#allocation5], %s94
          %s97 = ssub.s32 128, 128
          %98 = vsyncadd %s92, %s97
          %s99 = smul.addr %s17, 128
          %s100 = scalar_lea.hbm %s2, %s99
          %s102 = sshll.u32 %s95, 4
          %s103 = int_to_ptr.vmem [resolvable:$true] %s102
          %105 = dma.hbm_to_vmem [thread:$0]  %s100, 128, %s103, %s92
        $region20: #{tpu_custom_call.1} parent=15 // pred_fallthru
          _
      $region16: #{tpu_custom_call.1} parent=5 // pred_fallthru
        _
      %p106 = scmp.le.s32.totalorder 1, %s17
      %p107 = scmp.lt.s32.totalorder %s17, 3
      %p108 = pnand %p106, %p107
      %p109 = pneg %p108
      // Predicated region
      $region21: #{tpu_custom_call.1} parent=5 // pred_check
        _
      $region22: #{tpu_custom_call.1} parent=5 // pred_check_branch
        %111 = sbr.rel (%p108) target = $region24
      $region23: #{tpu_custom_call.1} parent=5 // pred_region
        %s112 = ssub.s32 %s17, 1
        %s113 = sand.u32 %s30, 1
        %s114 = scalar_lea.sflag [#allocation6], %s113
        %s115 = sand.u32 %s30, 1
        %s116 = smul.addr %s115, 8
        %s117 = scalar_lea.vmem [#allocation5], %s116
        // Predicated region
        $region25: #{tpu_custom_call.1} parent=23 // pred_check
          %p118 = pneg %p43
        $region26: #{tpu_custom_call.1} parent=23 // pred_check_branch
          %120 = sbr.rel (%p118) target = $region28
        $region27: #{tpu_custom_call.1} parent=23 // pred_region
          %121 = dma.done %s114, 128
        $region28: #{tpu_custom_call.1} parent=23 // pred_fallthru
          _
        %s122 = sand.u32 %s30, 1
        %s123 = scalar_lea.sflag [#allocation6], %s122
        %s124 = sand.u32 %s30, 1
        %s125 = smul.addr %s124, 8
        %s126 = scalar_lea.vmem [#allocation5], %s125
        %p127 = pneg %p43
        %p128 = pneg %p40
        %p129 = pneg %p69
        %p130 = pneg %p66
        %s131 = sand.u32 %s56, 1
        %s132 = scalar_lea.sflag [#allocation7], %s131
        %s133 = sand.u32 %s56, 1
        %s134 = smul.addr %s133, 8
        %s135 = scalar_lea.vmem [#allocation8], %s134
        %s136 = sld [smem:[#allocation3]]
        %s137 = sld [smem:[#allocation4]]
        %v138 = vld [vmem:[%s117] sm:$0xff]
        %139 = vadd.xlane.f32.xlu0 %v138
        %v140 = vpop.xlane.xlu0 %139
        %v141 = vmul.f32 %v138, %v138
        %142 = vadd.xlane.f32.xlu0 %v141
        %v143 = vpop.xlane.xlu0 %142
        %v144 = vmul.f32 %v140, 0.0078125
        %v145 = vmul.f32 %v144, 128.0
        %v146 = vmul.f32 %v145, %v144
        %v147 = vsub.f32 %v143, %v146
        %v148 = vmul.f32 %v147, 0.007874016
        %v149 = vmax.f32 %v148, 0.0
        %v150 = vadd.f32 %v149, 1e-05
        %v151 = vrsqrt.pop %v150
        %v152 = vstv %s136
        %v153 = vmul.f32 %v152, %v151
        %v154 = vsub.f32 %v138, %v144
        %v155 = vmul.f32 %v154, %v153
        %v156 = vstv %s137
        %v157 = vadd.f32 %v155, %v156
        %158 = vst [vmem:[%s135] sm:$0xff] %v157
        %s159 = sand.u32 %s56, 1
        %s160 = scalar_lea.sflag [#allocation7], %s159
        %s161 = sand.u32 %s56, 1
        %s162 = smul.addr %s161, 8
        %s163 = scalar_lea.vmem [#allocation8], %s162
        // Predicated region
        $region29: #{tpu_custom_call.1} parent=23 // pred_check
          %p164 = pneg %p66
        $region30: #{tpu_custom_call.1} parent=23 // pred_check_branch
          %166 = sbr.rel (%p164) target = $region32
        $region31: #{tpu_custom_call.1} parent=23 // pred_region
          %s168 = ssub.s32 128, 128
          %169 = vsyncadd %s160, %s168
          %s170 = smul.addr %s22, 128
          %s171 = scalar_lea.hbm %s3, %s170
          %s173 = sshll.u32 %s163, 4
          %s174 = int_to_ptr.vmem [resolvable:$true] %s173
          %176 = dma.vmem_to_hbm [thread:$0]  %s174, 128, %s171, %s160
        $region32: #{tpu_custom_call.1} parent=23 // pred_fallthru
          _
      $region24: #{tpu_custom_call.1} parent=5 // pred_fallthru
        _
      %p177 = scmp.le.s32.totalorder 2, %s17
      // Predicated region
      $region33: #{tpu_custom_call.1} parent=5 // pred_check
        %p178 = pneg %p177
      $region34: #{tpu_custom_call.1} parent=5 // pred_check_branch
        %180 = sbr.rel (%p178) target = $region36
      $region35: #{tpu_custom_call.1} parent=5 // pred_region
        %s181 = ssub.s32 %s17, 2
        // Predicated region
        $region37: #{tpu_custom_call.1} parent=35 // pred_check
          %p182 = pneg %p72
        $region38: #{tpu_custom_call.1} parent=35 // pred_check_branch
          %184 = sbr.rel (%p182) target = $region40
        $region39: #{tpu_custom_call.1} parent=35 // pred_region
          %s185 = sand.u32 %s57, 1
          %s186 = scalar_lea.sflag [#allocation7], %s185
          %s187 = sand.u32 %s57, 1
          %s188 = smul.addr %s187, 8
          %s189 = scalar_lea.vmem [#allocation8], %s188
          %190 = dma.done %s186, 128
        $region40: #{tpu_custom_call.1} parent=35 // pred_fallthru
          _
      $region36: #{tpu_custom_call.1} parent=5 // pred_fallthru
        _
    $region6: #{tpu_custom_call.1} parent=1 // loop_footer
      %s21 = sadd.s32 1, %s17
    $region7: #{tpu_custom_call.1} parent=1 // loop_footer_branch
      %16 = sbr.rel target = $region3
    $region8: #{tpu_custom_call.1} parent=1 // loop_exit
      _
    %191 = vsyncpa [#allocation6], 1
    %s192 = scalar_lea.sflag [#allocation6], 1
    %193 = vsyncpa %s192, 1
    %194 = vsyncpa [#allocation7], 1
    %s195 = scalar_lea.sflag [#allocation7], 1
    %196 = vsyncpa %s195, 1

</llo_original>
